<compile_context>
chip_gen: v5e
topology: v5e:2x2
jax: 0.10.0
libtpu: 0.0.40
codegen_flags: <defaults>
</compile_context>

<pallas_src>
import functools

import jax
import jax.numpy as jnp
from jax import lax
from jax.experimental import pallas as pl
from jax.experimental.pallas import tpu as pltpu


def _round_up(n, m):
    return (n + m - 1) // m * m


def _mish(h):
    # mish(h) = h * tanh(softplus(h)) = h * (t^2 + 2t) / (t^2 + 2t + 2), t = e^h.
    # Clamp the exp; for h > 20 the ratio equals 1.0 in f32, so mish(h) == h
    # falls out of the formula itself (no select needed).
    t = jnp.exp(jnp.minimum(h, 20.0))           # 1 EUP transcendental / element
    num = t * (t + 2.0)
    den = num + 2.0                             # den >= 2, never zero
    r = pl.reciprocal(den, approx=True)         # cheap EUP rcp
    r = r * (2.0 - den * r)                     # one Newton refinement on the VPU
    return h * num * r


def critic_obs_act_kernel(
    x_ref,      # (TILE_B, obs_dim)  batch on sublanes, natural layout
    a_ref,      # (TILE_B, act_dim)
    w1o_ref,    # (2*H1, obs_dim)    fused layer-1 weights, obs columns
    w1a_ref,    # (2*H1, act_dim)    fused layer-1 weights, action columns
    b1_ref,     # (2*H1, 1)
    w2_ref,     # (2*H2, 2*H1)       block-diagonal (both heads)
    b2_ref,     # (2*H2, 1)
    w3_ref,     # (2, 2*H2)
    b3_ref,     # (2, 1)
    q_ref,      # (2, TILE_B)        row 0 = q1, row 1 = q2
):
    """Fused double-critic MLP for one batch tile; batch-in-lanes activations."""
    contract_last = (((1,), (1,)), ((), ()))    # contract both last dims (rhs "T")

    # Layer 1: (2*H1, TILE_B) = W1_obs . x^T + W1_act . a^T + b1
    h = lax.dot_general(w1o_ref[...], x_ref[...], contract_last,
                        preferred_element_type=jnp.float32)
    h += lax.dot_general(w1a_ref[...], a_ref[...], contract_last,
                         preferred_element_type=jnp.float32)
    h += b1_ref[...]
    h = _mish(h)

    # Layer 2: block-diagonal, both heads at once.
    h = jnp.dot(w2_ref[...], h, preferred_element_type=jnp.float32) + b2_ref[...]
    h = _mish(h)

    # Layer 3: lane-dense (2, TILE_B) output slab, single full-width store.
    q = jnp.dot(w3_ref[...], h, preferred_element_type=jnp.float32) + b3_ref[...]
    q_ref[...] = q.astype(q_ref.dtype)


def _fuse_heads(q1_params, q2_params, obs_dim):
    """Stack Q1/Q2 into one fused network (block-diagonal hidden layers)."""
    w11, b11, w12, b12, w13, b13 = q1_params
    w21, b21, w22, b22, w23, b23 = q2_params
    h1, h2 = w12.shape[1], w12.shape[0]

    # Layer 1: stack heads along the output dim, then split obs/action columns.
    w1 = jnp.concatenate([w11, w21], axis=0)                 # (2*h1, in_dim)
    w1o, w1a = w1[:, :obs_dim], w1[:, obs_dim:]
    b1 = jnp.concatenate([b11, b21], axis=0)                 # (2*h1, 1)

    # Layer 2: block-diagonal.
    w2 = jnp.zeros((2 * h2, 2 * h1), jnp.float32)
    w2 = w2.at[:h2, :h1].set(w12).at[h2:, h1:].set(w22)
    b2 = jnp.concatenate([b12, b22], axis=0)                 # (2*h2, 1)

    # Layer 3: row 0 reads head-1 features, row 1 reads head-2 features.
    w3 = jnp.zeros((2, 2 * h2), jnp.float32)
    w3 = w3.at[0:1, :h2].set(w13).at[1:2, h2:].set(w23)
    b3 = jnp.concatenate([b13, b23], axis=0)                 # (2, 1)

    return w1o, w1a, b1, w2, b2, w3, b3


def _choose_tile(batch, tile_b):
    if batch < 256:
        return batch                      # single step; block dims == full dims
    # >= 2 grid steps so both v7x TensorCores get work; lane-dense (x128) tiles.
    return min(int(tile_b), _round_up(pl.cdiv(batch, 2), 128))


@functools.partial(jax.jit, static_argnames=("tile_b",))
def critic_obs_act_forward(x, action, q1_params, q2_params, *, tile_b=8192):
    """Equivalent of CriticObsAct.forward -> (q1, q2), each of shape (B,)."""
    B = x.shape[0]
    xf = x.reshape(B, -1).astype(jnp.float32)        # x.view(B, -1)
    af = action.reshape(B, -1).astype(jnp.float32)
    obs_dim, act_dim = xf.shape[1], af.shape[1]

    params = _fuse_heads(q1_params, q2_params, obs_dim)
    w1o, w1a, b1, w2, b2, w3, b3 = params
    H1f, H2f = w2.shape[1], w2.shape[0]              # fused (2x) hidden widths

    tb = _choose_tile(B, tile_b)
    grid = (pl.cdiv(B, tb),)

    # Advisory cost: 3 fused matmuls + exp/rcp per hidden element.
    flops = 2 * B * (H1f * (obs_dim + act_dim) + H2f * H1f + 2 * H2f)
    transcendentals = 2 * B * (H1f + H2f)
    bytes_accessed = 4 * (xf.size + af.size + sum(int(p.size) for p in params) + 2 * B)
    cost = pl.CostEstimate(flops=flops, transcendentals=transcendentals,
                           bytes_accessed=bytes_accessed)

    x_spec = pl.BlockSpec((tb, obs_dim), lambda i: (i, 0))
    a_spec = pl.BlockSpec((tb, act_dim), lambda i: (i, 0))
    param_specs = [pl.BlockSpec(p.shape, lambda i: (0, 0)) for p in params]
    out_spec = pl.BlockSpec((2, tb), lambda i: (0, i))

    q = pl.pallas_call(
        critic_obs_act_kernel,
        out_shape=jax.ShapeDtypeStruct((2, B), jnp.float32),
        grid=grid,
        in_specs=[x_spec, a_spec] + param_specs,
        out_specs=out_spec,
        compiler_params=pltpu.CompilerParams(
            dimension_semantics=("parallel",)),
        cost_estimate=cost,
    )(xf, af, *params)

    return q[0], q[1]


def init_head_params(key, in_dim, mlp_dims):
    """One critic head: weights stored as (out_dim, in_dim), biases as (out_dim, 1)."""
    dims = [in_dim] + list(mlp_dims) + [1]
    keys = jax.random.split(key, 2 * (len(dims) - 1))
    params = []
    for i in range(len(dims) - 1):
        fan_in, fan_out = dims[i], dims[i + 1]
        w = jax.random.normal(keys[2 * i], (fan_out, fan_in), jnp.float32) * (
            1.0 / jnp.sqrt(jnp.float32(fan_in)))
        b = jax.random.normal(keys[2 * i + 1], (fan_out, 1), jnp.float32) * 0.01
        params += [w, b]
    return tuple(params)


def critic_obs_act_reference(x, action, q1_params, q2_params):
    """Pure-JAX reference (exact Mish) for sanity checking."""
    B = x.shape[0]
    xa = jnp.concatenate(
        [x.reshape(B, -1), action.reshape(B, -1)], axis=-1).astype(jnp.float32)

    def head(params):
        w1, b1, w2, b2, w3, b3 = params
        h = xa @ w1.T + b1.T
        h = h * jnp.tanh(jax.nn.softplus(h))
        h = h @ w2.T + b2.T
        h = h * jnp.tanh(jax.nn.softplus(h))
        return (h @ w3.T + b3.T)[:, 0]

    return head(q1_params), head(q2_params)


if __name__ == "__main__":
    # Small shapes consistent with the module: obs (2, 4, 4) -> obs_dim=16,
    # action_dim=4, action_steps=1, mlp_dims=[32, 32].
    batch = 2
    obs_shape = (4, 4)
    action_dim, action_steps = 4, 1
    mlp_dims = [32, 32]
    obs_dim = obs_shape[0] * obs_shape[1]
    in_dim = obs_dim + action_dim * action_steps

    key = jax.random.PRNGKey(0)
    k1, k2, kx, ka = jax.random.split(key, 4)
    q1_params = init_head_params(k1, in_dim, mlp_dims)
    # PyTorch inits Q2 = deepcopy(Q1); after training they differ, so use
    # independent params here to exercise the general fused two-head forward.
    q2_params = init_head_params(k2, in_dim, mlp_dims)

    x = jax.random.normal(kx, (batch,) + obs_shape, jnp.float32)
    action = jax.random.normal(ka, (batch, action_dim * action_steps), jnp.float32)

    q1, q2 = critic_obs_act_forward(x, action, q1_params, q2_params)
    q1, q2 = jax.block_until_ready((q1, q2))

    r1, r2 = critic_obs_act_reference(x, action, q1_params, q2_params)
    assert q1.shape == (batch,) and q2.shape == (batch,)
    assert jnp.allclose(q1, r1, atol=1e-4, rtol=1e-4), (q1, r1)
    assert jnp.allclose(q2, r2, atol=1e-4, rtol=1e-4), (q2, r2)

    # TODO(synk): ResidualMLP / use_layernorm variants of the spec (off by
    # default) are not implemented in this kernel.
    print("KERNEL_OK")
</pallas_src>

<mosaic_0001>
module attributes {stable_mosaic.version = 11 : i64} {
  func.func @critic_obs_act_kernel(%arg0: i32, %arg1: memref<2x16xf32, #tpu.memory_space<vmem>>, %arg2: memref<2x4xf32, #tpu.memory_space<vmem>>, %arg3: memref<64x16xf32, #tpu.memory_space<vmem>>, %arg4: memref<64x4xf32, #tpu.memory_space<vmem>>, %arg5: memref<64x1xf32, #tpu.memory_space<vmem>>, %arg6: memref<64x64xf32, #tpu.memory_space<vmem>>, %arg7: memref<64x1xf32, #tpu.memory_space<vmem>>, %arg8: memref<2x64xf32, #tpu.memory_space<vmem>>, %arg9: memref<2x1xf32, #tpu.memory_space<vmem>>, %arg10: memref<2x2xf32, #tpu.memory_space<vmem>>) attributes {dimension_semantics = [#tpu.dimension_semantics<parallel>], iteration_bounds = array<i64: 1>, scalar_prefetch = 0 : i64, scratch_operands = 0 : i64, tpu.core_type = #tpu.core_type<tc>, window_params = [{transform_indices = @transform_0, window_bounds = array<i64: 2, 16>}, {transform_indices = @transform_1, window_bounds = array<i64: 2, 4>}, {pipeline_mode = #tpu.pipeline_mode<synchronous>, transform_indices = @transform_2, window_bounds = array<i64: 64, 16>}, {pipeline_mode = #tpu.pipeline_mode<synchronous>, transform_indices = @transform_3, window_bounds = array<i64: 64, 4>}, {pipeline_mode = #tpu.pipeline_mode<synchronous>, transform_indices = @transform_4, window_bounds = array<i64: 64, 1>}, {pipeline_mode = #tpu.pipeline_mode<synchronous>, transform_indices = @transform_5, window_bounds = array<i64: 64, 64>}, {pipeline_mode = #tpu.pipeline_mode<synchronous>, transform_indices = @transform_6, window_bounds = array<i64: 64, 1>}, {pipeline_mode = #tpu.pipeline_mode<synchronous>, transform_indices = @transform_7, window_bounds = array<i64: 2, 64>}, {pipeline_mode = #tpu.pipeline_mode<synchronous>, transform_indices = @transform_8, window_bounds = array<i64: 2, 1>}, {transform_indices = @transform_9, window_bounds = array<i64: 2, 2>}]} {
    %c0 = arith.constant 0 : index
    %c0_0 = arith.constant 0 : index
    %0 = vector.load %arg3[%c0, %c0_0] : memref<64x16xf32, #tpu.memory_space<vmem>>, vector<64x16xf32>
    %c0_1 = arith.constant 0 : index
    %c0_2 = arith.constant 0 : index
    %1 = vector.load %arg1[%c0_1, %c0_2] : memref<2x16xf32, #tpu.memory_space<vmem>>, vector<2x16xf32>
    %cst = arith.constant dense<0.000000e+00> : vector<64x2xf32>
    %2 = tpu.matmul %0, %1, %cst {dimension_numbers = #tpu.dot_dimension_numbers<[1], [1], [0], [0], [0, 0, 1, 0], [], []>} : vector<64x16xf32>, vector<2x16xf32>, vector<64x2xf32> -> vector<64x2xf32>
    %c0_3 = arith.constant 0 : index
    %c0_4 = arith.constant 0 : index
    %3 = vector.load %arg4[%c0_3, %c0_4] : memref<64x4xf32, #tpu.memory_space<vmem>>, vector<64x4xf32>
    %c0_5 = arith.constant 0 : index
    %c0_6 = arith.constant 0 : index
    %4 = vector.load %arg2[%c0_5, %c0_6] : memref<2x4xf32, #tpu.memory_space<vmem>>, vector<2x4xf32>
    %cst_7 = arith.constant dense<0.000000e+00> : vector<64x2xf32>
    %5 = tpu.matmul %3, %4, %cst_7 {dimension_numbers = #tpu.dot_dimension_numbers<[1], [1], [0], [0], [0, 0, 1, 0], [], []>} : vector<64x4xf32>, vector<2x4xf32>, vector<64x2xf32> -> vector<64x2xf32>
    %6 = arith.addf %2, %5 : vector<64x2xf32>
    %c0_8 = arith.constant 0 : index
    %c0_9 = arith.constant 0 : index
    %7 = vector.load %arg5[%c0_8, %c0_9] : memref<64x1xf32, #tpu.memory_space<vmem>>, vector<64x1xf32>
    %8 = vector.broadcast %7 : vector<64x1xf32> to vector<64x2xf32>
    %9 = arith.addf %6, %8 : vector<64x2xf32>
    %cst_10 = arith.constant 2.000000e+01 : f32
    %10 = vector.broadcast %cst_10 : f32 to vector<64x2xf32>
    %11 = arith.minimumf %9, %10 : vector<64x2xf32>
    %12 = math.exp %11 : vector<64x2xf32>
    %cst_11 = arith.constant 2.000000e+00 : f32
    %13 = vector.broadcast %cst_11 : f32 to vector<64x2xf32>
    %14 = arith.addf %12, %13 : vector<64x2xf32>
    %15 = arith.mulf %12, %14 : vector<64x2xf32>
    %cst_12 = arith.constant 2.000000e+00 : f32
    %16 = vector.broadcast %cst_12 : f32 to vector<64x2xf32>
    %17 = arith.addf %15, %16 : vector<64x2xf32>
    %18 = tpu.reciprocal %17 {approx = true} : vector<64x2xf32> -> vector<64x2xf32>
    %19 = arith.mulf %17, %18 : vector<64x2xf32>
    %cst_13 = arith.constant 2.000000e+00 : f32
    %20 = vector.broadcast %cst_13 : f32 to vector<64x2xf32>
    %21 = arith.subf %20, %19 : vector<64x2xf32>
    %22 = arith.mulf %18, %21 : vector<64x2xf32>
    %23 = arith.mulf %9, %15 : vector<64x2xf32>
    %24 = arith.mulf %23, %22 : vector<64x2xf32>
    %c0_14 = arith.constant 0 : index
    %c0_15 = arith.constant 0 : index
    %25 = vector.load %arg6[%c0_14, %c0_15] : memref<64x64xf32, #tpu.memory_space<vmem>>, vector<64x64xf32>
    %cst_16 = arith.constant dense<0.000000e+00> : vector<64x2xf32>
    %26 = tpu.matmul %25, %24, %cst_16 {dimension_numbers = #tpu.dot_dimension_numbers<[1], [0], [0], [1], [0, 0, 1, 1], [], []>} : vector<64x64xf32>, vector<64x2xf32>, vector<64x2xf32> -> vector<64x2xf32>
    %c0_17 = arith.constant 0 : index
    %c0_18 = arith.constant 0 : index
    %27 = vector.load %arg7[%c0_17, %c0_18] : memref<64x1xf32, #tpu.memory_space<vmem>>, vector<64x1xf32>
    %28 = vector.broadcast %27 : vector<64x1xf32> to vector<64x2xf32>
    %29 = arith.addf %26, %28 : vector<64x2xf32>
    %cst_19 = arith.constant 2.000000e+01 : f32
    %30 = vector.broadcast %cst_19 : f32 to vector<64x2xf32>
    %31 = arith.minimumf %29, %30 : vector<64x2xf32>
    %32 = math.exp %31 : vector<64x2xf32>
    %cst_20 = arith.constant 2.000000e+00 : f32
    %33 = vector.broadcast %cst_20 : f32 to vector<64x2xf32>
    %34 = arith.addf %32, %33 : vector<64x2xf32>
    %35 = arith.mulf %32, %34 : vector<64x2xf32>
    %cst_21 = arith.constant 2.000000e+00 : f32
    %36 = vector.broadcast %cst_21 : f32 to vector<64x2xf32>
    %37 = arith.addf %35, %36 : vector<64x2xf32>
    %38 = tpu.reciprocal %37 {approx = true} : vector<64x2xf32> -> vector<64x2xf32>
    %39 = arith.mulf %37, %38 : vector<64x2xf32>
    %cst_22 = arith.constant 2.000000e+00 : f32
    %40 = vector.broadcast %cst_22 : f32 to vector<64x2xf32>
    %41 = arith.subf %40, %39 : vector<64x2xf32>
    %42 = arith.mulf %38, %41 : vector<64x2xf32>
    %43 = arith.mulf %29, %35 : vector<64x2xf32>
    %44 = arith.mulf %43, %42 : vector<64x2xf32>
    %c0_23 = arith.constant 0 : index
    %c0_24 = arith.constant 0 : index
    %45 = vector.load %arg8[%c0_23, %c0_24] : memref<2x64xf32, #tpu.memory_space<vmem>>, vector<2x64xf32>
    %cst_25 = arith.constant dense<0.000000e+00> : vector<2x2xf32>
    %46 = tpu.matmul %45, %44, %cst_25 {dimension_numbers = #tpu.dot_dimension_numbers<[1], [0], [0], [1], [0, 0, 1, 1], [], []>} : vector<2x64xf32>, vector<64x2xf32>, vector<2x2xf32> -> vector<2x2xf32>
    %c0_26 = arith.constant 0 : index
    %c0_27 = arith.constant 0 : index
    %47 = vector.load %arg9[%c0_26, %c0_27] : memref<2x1xf32, #tpu.memory_space<vmem>>, vector<2x1xf32>
    %48 = vector.broadcast %47 : vector<2x1xf32> to vector<2x2xf32>
    %49 = arith.addf %46, %48 : vector<2x2xf32>
    %c0_28 = arith.constant 0 : index
    %c0_29 = arith.constant 0 : index
    %50 = vector.load %arg10[%c0_28, %c0_29] : memref<2x2xf32, #tpu.memory_space<vmem>>, vector<2x2xf32>
    tpu.vector_store %arg10[%c0_28, %c0_29], %49 {strides = array<i32>} : memref<2x2xf32, #tpu.memory_space<vmem>>, vector<2x2xf32>,
    return
  }
  func.func @transform_0(%arg0: i32) -> (i32, i32) {
    %c0_i32 = arith.constant 0 : i32
    %c0_i32_0 = arith.constant 0 : i32
    return %arg0, %c0_i32 : i32, i32
  }
  func.func @transform_1(%arg0: i32) -> (i32, i32) {
    %c0_i32 = arith.constant 0 : i32
    %c0_i32_0 = arith.constant 0 : i32
    return %arg0, %c0_i32 : i32, i32
  }
  func.func @transform_2(%arg0: i32) -> (i32, i32) {
    %c0_i32 = arith.constant 0 : i32
    %c0_i32_0 = arith.constant 0 : i32
    %c0_i32_1 = arith.constant 0 : i32
    return %c0_i32, %c0_i32_0 : i32, i32
  }
  func.func @transform_3(%arg0: i32) -> (i32, i32) {
    %c0_i32 = arith.constant 0 : i32
    %c0_i32_0 = arith.constant 0 : i32
    %c0_i32_1 = arith.constant 0 : i32
    return %c0_i32, %c0_i32_0 : i32, i32
  }
  func.func @transform_4(%arg0: i32) -> (i32, i32) {
    %c0_i32 = arith.constant 0 : i32
    %c0_i32_0 = arith.constant 0 : i32
    %c0_i32_1 = arith.constant 0 : i32
    return %c0_i32, %c0_i32_0 : i32, i32
  }
  func.func @transform_5(%arg0: i32) -> (i32, i32) {
    %c0_i32 = arith.constant 0 : i32
    %c0_i32_0 = arith.constant 0 : i32
    %c0_i32_1 = arith.constant 0 : i32
    return %c0_i32, %c0_i32_0 : i32, i32
  }
  func.func @transform_6(%arg0: i32) -> (i32, i32) {
    %c0_i32 = arith.constant 0 : i32
    %c0_i32_0 = arith.constant 0 : i32
    %c0_i32_1 = arith.constant 0 : i32
    return %c0_i32, %c0_i32_0 : i32, i32
  }
  func.func @transform_7(%arg0: i32) -> (i32, i32) {
    %c0_i32 = arith.constant 0 : i32
    %c0_i32_0 = arith.constant 0 : i32
    %c0_i32_1 = arith.constant 0 : i32
    return %c0_i32, %c0_i32_0 : i32, i32
  }
  func.func @transform_8(%arg0: i32) -> (i32, i32) {
    %c0_i32 = arith.constant 0 : i32
    %c0_i32_0 = arith.constant 0 : i32
    %c0_i32_1 = arith.constant 0 : i32
    return %c0_i32, %c0_i32_0 : i32, i32
  }
  func.func @transform_9(%arg0: i32) -> (i32, i32) {
    %c0_i32 = arith.constant 0 : i32
    %c0_i32_0 = arith.constant 0 : i32
    return %c0_i32, %arg0 : i32, i32
  }
}

</mosaic_0001>

<llo_original>
// kernel: critic_obs_act_forward.1
$region0: #{critic_obs_act_forward.1}
  #allocation0 [shape = 'u32[]', space=smem, size = 0x4, offset = 0x4, fixed_abs, tag = 'smem constant byte address 0x4 - core index']
  #allocation1 [shape = 'u32[72,128]{1,0:T(1,128)}', space=vmem, size = 0x9000, scoped, tag = 'internal scratch']
  %s0 = inlined_call_operand.vmem [shape: f32[2,16], index: 0, kind: input, shape index: {}]
  %s1 = inlined_call_operand.vmem [shape: f32[2,4], index: 1, kind: input, shape index: {}]
  %s2 = inlined_call_operand.vmem [shape: f32[64,16], index: 2, kind: input, shape index: {}]
  %s3 = inlined_call_operand.vmem [shape: f32[64,4], index: 3, kind: input, shape index: {}]
  %s4 = inlined_call_operand.vmem [shape: f32[64,1], index: 4, kind: input, shape index: {}]
  %s5 = inlined_call_operand.vmem [shape: f32[64,64], index: 5, kind: input, shape index: {}]
  %s6 = inlined_call_operand.vmem [shape: f32[64,1], index: 6, kind: input, shape index: {}]
  %s7 = inlined_call_operand.vmem [shape: f32[2,64], index: 7, kind: input, shape index: {}]
  %s8 = inlined_call_operand.vmem [shape: f32[2,1], index: 8, kind: input, shape index: {}]
  %s9 = inlined_call_operand.vmem [shape: f32[2,2], index: 9, kind: output, shape index: {}]
  %s10 = sld [smem:[#allocation0]]
  $region46: #{critic_obs_act_forward.1} parent=0
    _
  %s12 = ssub.s32 1, %s10
  %s13 = scalar_select 0, %s12, %s10
  // Predicated region
  $region2: #{critic_obs_act_forward.1} parent=0 // pred_check
    _
  $region3: #{critic_obs_act_forward.1} parent=0 // pred_check_branch
    %15 = sbr.rel (0) target = $region5
  $region4: #{critic_obs_act_forward.1} parent=0 // pred_region
    _
  $region5: #{critic_obs_act_forward.1} parent=0 // pred_fallthru
    _
  // Predicated region
  $region6: #{critic_obs_act_forward.1} parent=0 // pred_check
    _
  $region7: #{critic_obs_act_forward.1} parent=0 // pred_check_branch
    %17 = sbr.rel (0) target = $region9
  $region8: #{critic_obs_act_forward.1} parent=0 // pred_region
    _
  $region9: #{critic_obs_act_forward.1} parent=0 // pred_fallthru
    _
  // Predicated region
  $region10: #{critic_obs_act_forward.1} parent=0 // pred_check
    _
  $region11: #{critic_obs_act_forward.1} parent=0 // pred_check_branch
    %19 = sbr.rel (0) target = $region13
  $region12: #{critic_obs_act_forward.1} parent=0 // pred_region
    _
  $region13: #{critic_obs_act_forward.1} parent=0 // pred_fallthru
    _
  // Predicated region
  $region14: #{critic_obs_act_forward.1} parent=0 // pred_check
    _
  $region15: #{critic_obs_act_forward.1} parent=0 // pred_check_branch
    %21 = sbr.rel (0) target = $region17
  $region16: #{critic_obs_act_forward.1} parent=0 // pred_region
    _
  $region17: #{critic_obs_act_forward.1} parent=0 // pred_fallthru
    _
  // Predicated region
  $region18: #{critic_obs_act_forward.1} parent=0 // pred_check
    _
  $region19: #{critic_obs_act_forward.1} parent=0 // pred_check_branch
    %23 = sbr.rel (0) target = $region21
  $region20: #{critic_obs_act_forward.1} parent=0 // pred_region
    _
  $region21: #{critic_obs_act_forward.1} parent=0 // pred_fallthru
    _
  // Predicated region
  $region22: #{critic_obs_act_forward.1} parent=0 // pred_check
    _
  $region23: #{critic_obs_act_forward.1} parent=0 // pred_check_branch
    %25 = sbr.rel (0) target = $region25
  $region24: #{critic_obs_act_forward.1} parent=0 // pred_region
    _
  $region25: #{critic_obs_act_forward.1} parent=0 // pred_fallthru
    _
  // Predicated region
  $region26: #{critic_obs_act_forward.1} parent=0 // pred_check
    _
  $region27: #{critic_obs_act_forward.1} parent=0 // pred_check_branch
    %27 = sbr.rel (0) target = $region29
  $region28: #{critic_obs_act_forward.1} parent=0 // pred_region
    _
  $region29: #{critic_obs_act_forward.1} parent=0 // pred_fallthru
    _
  // Predicated region
  $region30: #{critic_obs_act_forward.1} parent=0 // pred_check
    _
  $region31: #{critic_obs_act_forward.1} parent=0 // pred_check_branch
    %29 = sbr.rel (0) target = $region33
  $region32: #{critic_obs_act_forward.1} parent=0 // pred_region
    _
  $region33: #{critic_obs_act_forward.1} parent=0 // pred_fallthru
    _
  // Predicated region
  $region34: #{critic_obs_act_forward.1} parent=0 // pred_check
    _
  $region35: #{critic_obs_act_forward.1} parent=0 // pred_check_branch
    %31 = sbr.rel (0) target = $region37
  $region36: #{critic_obs_act_forward.1} parent=0 // pred_region
    _
  $region37: #{critic_obs_act_forward.1} parent=0 // pred_fallthru
    _
  %v32 = vld [vmem:[%s2] sm:$0xff]
  %v33 = vld [vmem:[%s2 + $0x8] sm:$0xff]
  %v34 = vld [vmem:[%s2 + $0x10] sm:$0xff]
  %v35 = vld [vmem:[%s2 + $0x18] sm:$0xff]
  %v36 = vld [vmem:[%s2 + $0x20] sm:$0xff]
  %v37 = vld [vmem:[%s2 + $0x28] sm:$0xff]
  %v38 = vld [vmem:[%s2 + $0x30] sm:$0xff]
  %v39 = vld [vmem:[%s2 + $0x38] sm:$0xff]
  %v40 = vld [vmem:[%s0] sm:$0x3]
  %v41 = vld [vmem:[%s3] sm:$0xff]
  %v42 = vld [vmem:[%s3 + $0x8] sm:$0xff]
  %v43 = vld [vmem:[%s3 + $0x10] sm:$0xff]
  %v44 = vld [vmem:[%s3 + $0x18] sm:$0xff]
  %v45 = vld [vmem:[%s3 + $0x20] sm:$0xff]
  %v46 = vld [vmem:[%s3 + $0x28] sm:$0xff]
  %v47 = vld [vmem:[%s3 + $0x30] sm:$0xff]
  %v48 = vld [vmem:[%s3 + $0x38] sm:$0xff]
  %v49 = vld [vmem:[%s1] sm:$0x3]
  %vm50 = vcmask 31744
  %v52 = vsel %vm50, %v41, 0
  %v55 = vsel %vm50, %v42, 0
  %v58 = vsel %vm50, %v43, 0
  %v61 = vsel %vm50, %v44, 0
  %v64 = vsel %vm50, %v45, 0
  %v67 = vsel %vm50, %v46, 0
  %v70 = vsel %vm50, %v47, 0
  %v73 = vsel %vm50, %v48, 0
  %v76 = vsel %vm50, %v49, 0
  %78 = vmatpush.xpose.msra.mxu0 0.0
  %79 = vmatpush.xpose.msra.mxu0 0.0
  %80 = vmatpush.xpose.msra.mxu0 0.0
  %81 = vmatpush.xpose.msra.mxu0 0.0
  %82 = vmatpush.xpose.msra.mxu0 0.0
  %83 = vmatpush.xpose.msra.mxu0 0.0
  %84 = vmatpush.xpose.msra.mxu0 0.0
  %85 = vmatpush.xpose.msra.mxu0 0.0
  %86 = vmatpush.xpose.msra.mxu0 0.0
  %87 = vmatpush.xpose.msra.mxu0 0.0
  %88 = vmatpush.xpose.msra.mxu0 0.0
  %89 = vmatpush.xpose.msra.mxu0 0.0
  %90 = vmatpush.xpose.msra.mxu0 0.0
  %91 = vmatpush.xpose.msra.mxu0 0.0
  %92 = vmatpush.xpose.msra.mxu0 0.0
  %93 = vmatpush.xpose.msra.mxu0 %v76
  %94 = vmatmul.f32.gmra.mxu0 %v52
  %v95 = vpop.f32.mrf.mxu0
  %v96 = vadd.f32 0.0, %v95
  %97 = vmatmul.f32.gmra.mxu0 %v55
  %v98 = vpop.f32.mrf.mxu0
  %v99 = vadd.f32 0.0, %v98
  %100 = vmatmul.f32.gmra.mxu0 %v58
  %v101 = vpop.f32.mrf.mxu0
  %v102 = vadd.f32 0.0, %v101
  %103 = vmatmul.f32.gmra.mxu0 %v61
  %v104 = vpop.f32.mrf.mxu0
  %v105 = vadd.f32 0.0, %v104
  %106 = vmatmul.f32.gmra.mxu0 %v64
  %v107 = vpop.f32.mrf.mxu0
  %v108 = vadd.f32 0.0, %v107
  %109 = vmatmul.f32.gmra.mxu0 %v67
  %v110 = vpop.f32.mrf.mxu0
  %v111 = vadd.f32 0.0, %v110
  %112 = vmatmul.f32.gmra.mxu0 %v70
  %v113 = vpop.f32.mrf.mxu0
  %v114 = vadd.f32 0.0, %v113
  %115 = vmatmul.f32.gmra.mxu0 %v73
  %v116 = vpop.f32.mrf.mxu0
  %v117 = vadd.f32 0.0, %v116
  %118 = vdwg.mxu0
  %vm119 = vcmask 130048
  %v121 = vsel %vm119, %v32, 0
  %v124 = vsel %vm119, %v33, 0
  %v127 = vsel %vm119, %v34, 0
  %v130 = vsel %vm119, %v35, 0
  %v133 = vsel %vm119, %v36, 0
  %v136 = vsel %vm119, %v37, 0
  %v139 = vsel %vm119, %v38, 0
  %v142 = vsel %vm119, %v39, 0
  %v145 = vsel %vm119, %v40, 0
  %147 = vmatpush.xpose.msra.mxu0 0.0
  %148 = vmatpush.xpose.msra.mxu0 0.0
  %149 = vmatpush.xpose.msra.mxu0 0.0
  %150 = vmatpush.xpose.msra.mxu0 0.0
  %151 = vmatpush.xpose.msra.mxu0 0.0
  %152 = vmatpush.xpose.msra.mxu0 0.0
  %153 = vmatpush.xpose.msra.mxu0 0.0
  %154 = vmatpush.xpose.msra.mxu0 0.0
  %155 = vmatpush.xpose.msra.mxu0 0.0
  %156 = vmatpush.xpose.msra.mxu0 0.0
  %157 = vmatpush.xpose.msra.mxu0 0.0
  %158 = vmatpush.xpose.msra.mxu0 0.0
  %159 = vmatpush.xpose.msra.mxu0 0.0
  %160 = vmatpush.xpose.msra.mxu0 0.0
  %161 = vmatpush.xpose.msra.mxu0 0.0
  %162 = vmatpush.xpose.msra.mxu0 %v145
  %163 = vmatmul.f32.gmra.mxu0 %v121
  %v164 = vpop.f32.mrf.mxu0
  %v165 = vadd.f32 %v96, %v164
  %166 = vmatmul.f32.gmra.mxu0 %v124
  %v167 = vpop.f32.mrf.mxu0
  %v168 = vadd.f32 %v99, %v167
  %169 = vmatmul.f32.gmra.mxu0 %v127
  %v170 = vpop.f32.mrf.mxu0
  %v171 = vadd.f32 %v102, %v170
  %172 = vmatmul.f32.gmra.mxu0 %v130
  %v173 = vpop.f32.mrf.mxu0
  %v174 = vadd.f32 %v105, %v173
  %175 = vmatmul.f32.gmra.mxu0 %v133
  %v176 = vpop.f32.mrf.mxu0
  %v177 = vadd.f32 %v108, %v176
  %178 = vmatmul.f32.gmra.mxu0 %v136
  %v179 = vpop.f32.mrf.mxu0
  %v180 = vadd.f32 %v111, %v179
  %181 = vmatmul.f32.gmra.mxu0 %v139
  %v182 = vpop.f32.mrf.mxu0
  %v183 = vadd.f32 %v114, %v182
  %184 = vmatmul.f32.gmra.mxu0 %v142
  %v185 = vpop.f32.mrf.mxu0
  %v186 = vadd.f32 %v117, %v185
  %187 = vdwg.mxu0
  %v188 = vld [vmem:[%s4] sm:$0xff]
  %v189 = vld [vmem:[%s4 + $0x8] sm:$0xff]
  %v190 = vld [vmem:[%s4 + $0x10] sm:$0xff]
  %v191 = vld [vmem:[%s4 + $0x18] sm:$0xff]
  %v192 = vld [vmem:[%s4 + $0x20] sm:$0xff]
  %v193 = vld [vmem:[%s4 + $0x28] sm:$0xff]
  %v194 = vld [vmem:[%s4 + $0x30] sm:$0xff]
  %v195 = vld [vmem:[%s4 + $0x38] sm:$0xff]
  %197 = vset.pattern.permute.xlu0 0
  %198 = vperm.xlu0 %197, %v188
  %v199 = vpop.permute.xlu0 %198
  %202 = vset.pattern.permute.xlu0 0
  %203 = vperm.xlu0 %202, %v189
  %v204 = vpop.permute.xlu0 %203
  %207 = vset.pattern.permute.xlu0 0
  %208 = vperm.xlu0 %207, %v190
  %v209 = vpop.permute.xlu0 %208
  %212 = vset.pattern.permute.xlu0 0
  %213 = vperm.xlu0 %212, %v191
  %v214 = vpop.permute.xlu0 %213
  %217 = vset.pattern.permute.xlu0 0
  %218 = vperm.xlu0 %217, %v192
  %v219 = vpop.permute.xlu0 %218
  %222 = vset.pattern.permute.xlu0 0
  %223 = vperm.xlu0 %222, %v193
  %v224 = vpop.permute.xlu0 %223
  %227 = vset.pattern.permute.xlu0 0
  %228 = vperm.xlu0 %227, %v194
  %v229 = vpop.permute.xlu0 %228
  %232 = vset.pattern.permute.xlu0 0
  %233 = vperm.xlu0 %232, %v195
  %v234 = vpop.permute.xlu0 %233
  %v236 = vadd.f32 %v165, %v199
  %v237 = vadd.f32 %v168, %v204
  %v238 = vadd.f32 %v171, %v209
  %v239 = vadd.f32 %v174, %v214
  %v240 = vadd.f32 %v177, %v219
  %v241 = vadd.f32 %v180, %v224
  %v242 = vadd.f32 %v183, %v229
  %v243 = vadd.f32 %v186, %v234
  %v244 = vmin.f32 %v236, 20.0
  %v245 = vmin.f32 %v237, 20.0
  %v246 = vmin.f32 %v238, 20.0
  %v247 = vmin.f32 %v239, 20.0
  %v248 = vmin.f32 %v240, 20.0
  %v249 = vmin.f32 %v241, 20.0
  %v250 = vmin.f32 %v242, 20.0
  %v251 = vmin.f32 %v243, 20.0
  %v252 = vmul.f32 %v244, 1.442695
  %v253 = vpow.pop %v252
  %v254 = vmul.f32 %v245, 1.442695
  %v255 = vpow.pop %v254
  %v256 = vmul.f32 %v246, 1.442695
  %v257 = vpow.pop %v256
  %v258 = vmul.f32 %v247, 1.442695
  %v259 = vpow.pop %v258
  %v260 = vmul.f32 %v248, 1.442695
  %v261 = vpow.pop %v260
  %v262 = vmul.f32 %v249, 1.442695
  %v263 = vpow.pop %v262
  %v264 = vmul.f32 %v250, 1.442695
  %v265 = vpow.pop %v264
  %v266 = vmul.f32 %v251, 1.442695
  %v267 = vpow.pop %v266
  %v268 = vadd.f32 %v253, 2.0
  %v269 = vadd.f32 %v255, 2.0
  %v270 = vadd.f32 %v257, 2.0
  %v271 = vadd.f32 %v259, 2.0
  %v272 = vadd.f32 %v261, 2.0
  %v273 = vadd.f32 %v263, 2.0
  %v274 = vadd.f32 %v265, 2.0
  %v275 = vadd.f32 %v267, 2.0
  %v276 = vmul.f32 %v253, %v268
  %v277 = vmul.f32 %v255, %v269
  %v278 = vmul.f32 %v257, %v270
  %v279 = vmul.f32 %v259, %v271
  %v280 = vmul.f32 %v261, %v272
  %v281 = vmul.f32 %v263, %v273
  %v282 = vmul.f32 %v265, %v274
  %v283 = vmul.f32 %v267, %v275
  %v284 = vadd.f32 %v276, 2.0
  %v285 = vadd.f32 %v277, 2.0
  %v286 = vadd.f32 %v278, 2.0
  %v287 = vadd.f32 %v279, 2.0
  %v288 = vadd.f32 %v280, 2.0
  %v289 = vadd.f32 %v281, 2.0
  %v290 = vadd.f32 %v282, 2.0
  %v291 = vadd.f32 %v283, 2.0
  %v292 = vrcp.pop %v284
  %v293 = vrcp.pop %v285
  %v294 = vrcp.pop %v286
  %v295 = vrcp.pop %v287
  %v296 = vrcp.pop %v288
  %v297 = vrcp.pop %v289
  %v298 = vrcp.pop %v290
  %v299 = vrcp.pop %v291
  %v300 = vmul.f32 %v284, %v292
  %v301 = vmul.f32 %v285, %v293
  %v302 = vmul.f32 %v286, %v294
  %v303 = vmul.f32 %v287, %v295
  %v304 = vmul.f32 %v288, %v296
  %v305 = vmul.f32 %v289, %v297
  %v306 = vmul.f32 %v290, %v298
  %v307 = vmul.f32 %v291, %v299
  %v308 = vsub.f32 2.0, %v300
  %v309 = vsub.f32 2.0, %v301
  %v310 = vsub.f32 2.0, %v302
  %v311 = vsub.f32 2.0, %v303
  %v312 = vsub.f32 2.0, %v304
  %v313 = vsub.f32 2.0, %v305
  %v314 = vsub.f32 2.0, %v306
  %v315 = vsub.f32 2.0, %v307
  %v316 = vmul.f32 %v292, %v308
  %v317 = vmul.f32 %v293, %v309
  %v318 = vmul.f32 %v294, %v310
  %v319 = vmul.f32 %v295, %v311
  %v320 = vmul.f32 %v296, %v312
  %v321 = vmul.f32 %v297, %v313
  %v322 = vmul.f32 %v298, %v314
  %v323 = vmul.f32 %v299, %v315
  %v324 = vmul.f32 %v236, %v276
  %v325 = vmul.f32 %v237, %v277
  %v326 = vmul.f32 %v238, %v278
  %v327 = vmul.f32 %v239, %v279
  %v328 = vmul.f32 %v240, %v280
  %v329 = vmul.f32 %v241, %v281
  %v330 = vmul.f32 %v242, %v282
  %v331 = vmul.f32 %v243, %v283
  %v332 = vmul.f32 %v324, %v316
  %v333 = vmul.f32 %v325, %v317
  %v334 = vmul.f32 %v326, %v318
  %v335 = vmul.f32 %v327, %v319
  %v336 = vmul.f32 %v328, %v320
  %v337 = vmul.f32 %v329, %v321
  %v338 = vmul.f32 %v330, %v322
  %v339 = vmul.f32 %v331, %v323
  %v340 = vld [vmem:[%s5] sm:$0xff]
  %v341 = vld [vmem:[%s5 + $0x8] sm:$0xff]
  %v342 = vld [vmem:[%s5 + $0x10] sm:$0xff]
  %v343 = vld [vmem:[%s5 + $0x18] sm:$0xff]
  %v344 = vld [vmem:[%s5 + $0x20] sm:$0xff]
  %v345 = vld [vmem:[%s5 + $0x28] sm:$0xff]
  %v346 = vld [vmem:[%s5 + $0x30] sm:$0xff]
  %v347 = vld [vmem:[%s5 + $0x38] sm:$0xff]
  %v348 = vld [vmem:[%s6] sm:$0xff]
  %v349 = vld [vmem:[%s6 + $0x8] sm:$0xff]
  %v350 = vld [vmem:[%s6 + $0x10] sm:$0xff]
  %v351 = vld [vmem:[%s6 + $0x18] sm:$0xff]
  %v352 = vld [vmem:[%s6 + $0x20] sm:$0xff]
  %v353 = vld [vmem:[%s6 + $0x28] sm:$0xff]
  %v354 = vld [vmem:[%s6 + $0x30] sm:$0xff]
  %v355 = vld [vmem:[%s6 + $0x38] sm:$0xff]
  %357 = vset.pattern.permute.xlu0 0
  %358 = vperm.xlu0 %357, %v348
  %v359 = vpop.permute.xlu0 %358
  %362 = vset.pattern.permute.xlu0 0
  %363 = vperm.xlu0 %362, %v349
  %v364 = vpop.permute.xlu0 %363
  %367 = vset.pattern.permute.xlu0 0
  %368 = vperm.xlu0 %367, %v350
  %v369 = vpop.permute.xlu0 %368
  %372 = vset.pattern.permute.xlu0 0
  %373 = vperm.xlu0 %372, %v351
  %v374 = vpop.permute.xlu0 %373
  %377 = vset.pattern.permute.xlu0 0
  %378 = vperm.xlu0 %377, %v352
  %v379 = vpop.permute.xlu0 %378
  %382 = vset.pattern.permute.xlu0 0
  %383 = vperm.xlu0 %382, %v353
  %v384 = vpop.permute.xlu0 %383
  %387 = vset.pattern.permute.xlu0 0
  %388 = vperm.xlu0 %387, %v354
  %v389 = vpop.permute.xlu0 %388
  %392 = vset.pattern.permute.xlu0 0
  %393 = vperm.xlu0 %392, %v355
  %v394 = vpop.permute.xlu0 %393
  %vm396 = vcmask 523264
  %v398 = vsel %vm396, %v340, 0
  %v401 = vsel %vm396, %v341, 0
  %v404 = vsel %vm396, %v342, 0
  %v407 = vsel %vm396, %v343, 0
  %v410 = vsel %vm396, %v344, 0
  %v413 = vsel %vm396, %v345, 0
  %v416 = vsel %vm396, %v346, 0
  %v419 = vsel %vm396, %v347, 0
  %421 = vmatpush.msra.mxu0 0.0
  %422 = vmatpush.msra.mxu0 0.0
  %423 = vmatpush.msra.mxu0 0.0
  %424 = vmatpush.msra.mxu0 0.0
  %425 = vmatpush.msra.mxu0 0.0
  %426 = vmatpush.msra.mxu0 0.0
  %427 = vmatpush.msra.mxu0 0.0
  %428 = vmatpush.msra.mxu0 0.0
  %429 = vmatpush.msra.mxu0 %v339
  %430 = vmatpush.msra.mxu0 %v338
  %431 = vmatpush.msra.mxu0 %v337
  %432 = vmatpush.msra.mxu0 %v336
  %433 = vmatpush.msra.mxu0 %v335
  %434 = vmatpush.msra.mxu0 %v334
  %435 = vmatpush.msra.mxu0 %v333
  %436 = vmatpush.msra.mxu0 %v332
  %437 = vmatmul.f32.gmra.mxu0 %v398
  %v438 = vpop.f32.mrf.mxu0
  %v439 = vadd.f32 %v359, %v438
  %440 = vmatmul.f32.gmra.mxu0 %v401
  %v441 = vpop.f32.mrf.mxu0
  %v442 = vadd.f32 %v364, %v441
  %443 = vmatmul.f32.gmra.mxu0 %v404
  %v444 = vpop.f32.mrf.mxu0
  %v445 = vadd.f32 %v369, %v444
  %446 = vmatmul.f32.gmra.mxu0 %v407
  %v447 = vpop.f32.mrf.mxu0
  %v448 = vadd.f32 %v374, %v447
  %449 = vmatmul.f32.gmra.mxu0 %v410
  %v450 = vpop.f32.mrf.mxu0
  %v451 = vadd.f32 %v379, %v450
  %452 = vmatmul.f32.gmra.mxu0 %v413
  %v453 = vpop.f32.mrf.mxu0
  %v454 = vadd.f32 %v384, %v453
  %455 = vmatmul.f32.gmra.mxu0 %v416
  %v456 = vpop.f32.mrf.mxu0
  %v457 = vadd.f32 %v389, %v456
  %458 = vmatmul.f32.gmra.mxu0 %v419
  %v459 = vpop.f32.mrf.mxu0
  %v460 = vadd.f32 %v394, %v459
  %461 = vdwg.mxu0
  %v462 = vmin.f32 %v439, 20.0
  %v463 = vmin.f32 %v442, 20.0
  %v464 = vmin.f32 %v445, 20.0
  %v465 = vmin.f32 %v448, 20.0
  %v466 = vmin.f32 %v451, 20.0
  %v467 = vmin.f32 %v454, 20.0
  %v468 = vmin.f32 %v457, 20.0
  %v469 = vmin.f32 %v460, 20.0
  %v470 = vmul.f32 %v462, 1.442695
  %v471 = vpow.pop %v470
  %v472 = vmul.f32 %v463, 1.442695
  %v473 = vpow.pop %v472
  %v474 = vmul.f32 %v464, 1.442695
  %v475 = vpow.pop %v474
  %v476 = vmul.f32 %v465, 1.442695
  %v477 = vpow.pop %v476
  %v478 = vmul.f32 %v466, 1.442695
  %v479 = vpow.pop %v478
  %v480 = vmul.f32 %v467, 1.442695
  %v481 = vpow.pop %v480
  %v482 = vmul.f32 %v468, 1.442695
  %v483 = vpow.pop %v482
  %v484 = vmul.f32 %v469, 1.442695
  %v485 = vpow.pop %v484
  %v486 = vadd.f32 %v471, 2.0
  %v487 = vadd.f32 %v473, 2.0
  %v488 = vadd.f32 %v475, 2.0
  %v489 = vadd.f32 %v477, 2.0
  %v490 = vadd.f32 %v479, 2.0
  %v491 = vadd.f32 %v481, 2.0
  %v492 = vadd.f32 %v483, 2.0
  %v493 = vadd.f32 %v485, 2.0
  %v494 = vmul.f32 %v471, %v486
  %v495 = vmul.f32 %v473, %v487
  %v496 = vmul.f32 %v475, %v488
  %v497 = vmul.f32 %v477, %v489
  %v498 = vmul.f32 %v479, %v490
  %v499 = vmul.f32 %v481, %v491
  %v500 = vmul.f32 %v483, %v492
  %v501 = vmul.f32 %v485, %v493
  %v502 = vadd.f32 %v494, 2.0
  %v503 = vadd.f32 %v495, 2.0
  %v504 = vadd.f32 %v496, 2.0
  %v505 = vadd.f32 %v497, 2.0
  %v506 = vadd.f32 %v498, 2.0
  %v507 = vadd.f32 %v499, 2.0
  %v508 = vadd.f32 %v500, 2.0
  %v509 = vadd.f32 %v501, 2.0
  %v510 = vrcp.pop %v502
  %v511 = vrcp.pop %v503
  %v512 = vrcp.pop %v504
  %v513 = vrcp.pop %v505
  %v514 = vrcp.pop %v506
  %v515 = vrcp.pop %v507
  %v516 = vrcp.pop %v508
  %v517 = vrcp.pop %v509
  %v518 = vmul.f32 %v502, %v510
  %v519 = vmul.f32 %v503, %v511
  %v520 = vmul.f32 %v504, %v512
  %v521 = vmul.f32 %v505, %v513
  %v522 = vmul.f32 %v506, %v514
  %v523 = vmul.f32 %v507, %v515
  %v524 = vmul.f32 %v508, %v516
  %v525 = vmul.f32 %v509, %v517
  %v526 = vsub.f32 2.0, %v518
  %v527 = vsub.f32 2.0, %v519
  %v528 = vsub.f32 2.0, %v520
  %v529 = vsub.f32 2.0, %v521
  %v530 = vsub.f32 2.0, %v522
  %v531 = vsub.f32 2.0, %v523
  %v532 = vsub.f32 2.0, %v524
  %v533 = vsub.f32 2.0, %v525
  %v534 = vmul.f32 %v510, %v526
  %v535 = vmul.f32 %v511, %v527
  %v536 = vmul.f32 %v512, %v528
  %v537 = vmul.f32 %v513, %v529
  %v538 = vmul.f32 %v514, %v530
  %v539 = vmul.f32 %v515, %v531
  %v540 = vmul.f32 %v516, %v532
  %v541 = vmul.f32 %v517, %v533
  %v542 = vmul.f32 %v439, %v494
  %v543 = vmul.f32 %v442, %v495
  %v544 = vmul.f32 %v445, %v496
  %v545 = vmul.f32 %v448, %v497
  %v546 = vmul.f32 %v451, %v498
  %v547 = vmul.f32 %v454, %v499
  %v548 = vmul.f32 %v457, %v500
  %v549 = vmul.f32 %v460, %v501
  %v550 = vmul.f32 %v542, %v534
  %v551 = vmul.f32 %v543, %v535
  %v552 = vmul.f32 %v544, %v536
  %v553 = vmul.f32 %v545, %v537
  %v554 = vmul.f32 %v546, %v538
  %v555 = vmul.f32 %v547, %v539
  %v556 = vmul.f32 %v548, %v540
  %v557 = vmul.f32 %v549, %v541
  %v558 = vld [vmem:[%s7] sm:$0x3]
  %v559 = vld [vmem:[%s8] sm:$0x3]
  %561 = vset.pattern.permute.xlu0 0
  %562 = vperm.xlu0 %561, %v559
  %v563 = vpop.permute.xlu0 %562
  %v566 = vsel %vm396, %v558, 0
  %568 = vmatpush.msra.mxu0 0.0
  %569 = vmatpush.msra.mxu0 0.0
  %570 = vmatpush.msra.mxu0 0.0
  %571 = vmatpush.msra.mxu0 0.0
  %572 = vmatpush.msra.mxu0 0.0
  %573 = vmatpush.msra.mxu0 0.0
  %574 = vmatpush.msra.mxu0 0.0
  %575 = vmatpush.msra.mxu0 0.0
  %576 = vmatpush.msra.mxu0 %v557
  %577 = vmatpush.msra.mxu0 %v556
  %578 = vmatpush.msra.mxu0 %v555
  %579 = vmatpush.msra.mxu0 %v554
  %580 = vmatpush.msra.mxu0 %v553
  %581 = vmatpush.msra.mxu0 %v552
  %582 = vmatpush.msra.mxu0 %v551
  %583 = vmatpush.msra.mxu0 %v550
  %584 = vmatmul.f32.gmra.mxu0 %v566
  %v585 = vpop.f32.mrf.mxu0
  %v586 = vadd.f32 %v563, %v585
  %587 = vdwg.mxu0
  %vm588 = vcmask 9216
  %589 = vst.msk [vmem:[%s9] sm:$0x3] %vm588, %v586
  // Predicated region
  $region38: #{critic_obs_act_forward.1} parent=0 // pred_check
    _
  $region39: #{critic_obs_act_forward.1} parent=0 // pred_check_branch
    %591 = sbr.rel (0) target = $region41
  $region40: #{critic_obs_act_forward.1} parent=0 // pred_region
    _
  $region41: #{critic_obs_act_forward.1} parent=0 // pred_fallthru
    _
  // Predicated region
  $region42: #{critic_obs_act_forward.1} parent=0 // pred_check
    _
  $region43: #{critic_obs_act_forward.1} parent=0 // pred_check_branch
    %593 = sbr.rel (0) target = $region45
  $region44: #{critic_obs_act_forward.1} parent=0 // pred_region
    _
  $region45: #{critic_obs_act_forward.1} parent=0 // pred_fallthru
    _

</llo_original>
